<compile_context>
chip_gen: v5e
topology: v5e:2x2
jax: 0.10.0
libtpu: 0.0.40
codegen_flags: <defaults>
</compile_context>

<pallas_src>
import jax
import jax.numpy as jnp
from jax import lax
from jax.experimental import pallas as pl
from jax.experimental.pallas import tpu as pltpu


def _round_up(x, m):
    return ((x + m - 1) // m) * m


# ---------------------------------------------------------------------------
# Phase 1: row-wise projections over the flattened (B*S, D) row matrix.
#   head       = relu(x @ Wh + bh)
#   child_proj = relu(x @ Wc + bc) @ Wp + bp
# ---------------------------------------------------------------------------
def _proj_kernel(x_ref, wh_ref, wc_ref, wp_ref, bias_ref,
                 head_ref, cproj_ref):
    x = x_ref[...]                       # (RT, D) bf16
    bh = bias_ref[0:1, :]                # (1, H) f32
    bc = bias_ref[1:2, :]
    bp = bias_ref[2:3, :]

    head = jnp.dot(x, wh_ref[...], preferred_element_type=jnp.float32)
    head = jnp.maximum(head + bh, 0.0)   # bias-add / relu in f32

    child = jnp.dot(x, wc_ref[...], preferred_element_type=jnp.float32)
    child = jnp.maximum(child + bc, 0.0)

    cproj = jnp.dot(child.astype(jnp.bfloat16), wp_ref[...],
                    preferred_element_type=jnp.float32)
    cproj = cproj + bp

    head_ref[...] = head.astype(head_ref.dtype)
    cproj_ref[...] = cproj.astype(cproj_ref.dtype)


# ---------------------------------------------------------------------------
# Phase 2: per-batch scores = head @ child_proj^T, NT-form (no transpose).
# ---------------------------------------------------------------------------
def _score_kernel(head_ref, cproj_ref, out_ref):
    # head_ref: (1, TQ, H) bf16, cproj_ref: (1, TK, H) bf16 -> (TQ, TK) f32
    out_ref[0] = lax.dot_general(
        head_ref[0], cproj_ref[0],
        dimension_numbers=(((1,), (1,)), ((), ())),
        preferred_element_type=jnp.float32)


def arc_biaffine_scorer(seq, w_head, b_head, w_child, b_child, w_proj, b_proj,
                        *, row_tile=512, score_tile=256):
    """seq: (B, S, D) f32; w_*: (D, H)/(H, H) pre-transposed; b_*: (1, H)."""
    B, S, D = seq.shape
    H = w_head.shape[1]

    # ---- tile / padding choices ----------------------------------------
    if S >= score_tile:
        tq = tk = score_tile             # lane-dense, 128-multiple tiles
        Sp = _round_up(S, score_tile)
    else:
        tq = tk = S                      # block == full array dims (valid)
        Sp = S

    seq_p = seq if Sp == S else jnp.pad(seq, ((0, 0), (0, Sp - S), (0, 0)))

    R = B * Sp
    if R >= row_tile:
        rt = row_tile
        Rp = _round_up(R, row_tile)
    else:
        rt = _round_up(R, 8)
        Rp = rt
    x_flat = seq_p.reshape(R, D)
    if Rp != R:
        x_flat = jnp.pad(x_flat, ((0, Rp - R), (0, 0)))

    # bf16 MXU operands; f32 accumulation happens inside the kernels.
    x_bf16 = x_flat.astype(jnp.bfloat16)
    wh = w_head.astype(jnp.bfloat16)
    wc = w_child.astype(jnp.bfloat16)
    wp = w_proj.astype(jnp.bfloat16)
    biases = jnp.concatenate(
        [b_head.reshape(1, H), b_child.reshape(1, H), b_proj.reshape(1, H)],
        axis=0).astype(jnp.float32)      # (3, H): single block / single DMA

    # ---- phase 1: flattened-row projections -----------------------------
    n_rt = Rp // rt
    proj_cost = pl.CostEstimate(
        flops=2 * Rp * D * H * 2 + 2 * Rp * H * H,
        transcendentals=0,
        bytes_accessed=(Rp * D * 2 + 2 * D * H * 2 + H * H * 2
                        + 3 * H * 4 + 2 * Rp * H * 2),
    )
    head_flat, cproj_flat = pl.pallas_call(
        _proj_kernel,
        out_shape=(jax.ShapeDtypeStruct((Rp, H), jnp.bfloat16),
                   jax.ShapeDtypeStruct((Rp, H), jnp.bfloat16)),
        grid_spec=pltpu.PrefetchScalarGridSpec(
            num_scalar_prefetch=0,
            grid=(n_rt,),
            in_specs=[
                pl.BlockSpec((rt, D), lambda r: (r, 0)),    # seq row tile
                pl.BlockSpec((D, H), lambda r: (0, 0)),     # W_head^T (resident)
                pl.BlockSpec((D, H), lambda r: (0, 0)),     # W_child^T
                pl.BlockSpec((H, H), lambda r: (0, 0)),     # W_proj^T
                pl.BlockSpec((3, H), lambda r: (0, 0)),     # stacked biases
            ],
            out_specs=[
                pl.BlockSpec((rt, H), lambda r: (r, 0)),
                pl.BlockSpec((rt, H), lambda r: (r, 0)),
            ],
        ),
        compiler_params=pltpu.CompilerParams(
            dimension_semantics=("parallel",)),
        cost_estimate=proj_cost,
    )(x_bf16, wh, wc, wp, biases)

    head = head_flat[:R].reshape(B, Sp, H)
    cproj = cproj_flat[:R].reshape(B, Sp, H)

    # ---- phase 2: per-batch biaffine scores ------------------------------
    nq = Sp // tq
    nk = Sp // tk
    score_cost = pl.CostEstimate(
        flops=2 * B * Sp * Sp * H,
        transcendentals=0,
        bytes_accessed=B * Sp * H * 2 * (nq + nk) + B * Sp * Sp * 4,
    )
    scores = pl.pallas_call(
        _score_kernel,
        out_shape=jax.ShapeDtypeStruct((B, Sp, Sp), jnp.float32),
        grid_spec=pltpu.PrefetchScalarGridSpec(
            num_scalar_prefetch=0,
            grid=(B, nq, nk),
            in_specs=[
                pl.BlockSpec((1, tq, H), lambda b, qi, ki: (b, qi, 0)),
                pl.BlockSpec((1, tk, H), lambda b, qi, ki: (b, ki, 0)),
            ],
            out_specs=pl.BlockSpec((1, tq, tk),
                                   lambda b, qi, ki: (b, qi, ki)),
        ),
        compiler_params=pltpu.CompilerParams(
            dimension_semantics=("parallel", "parallel", "parallel")),
        cost_estimate=score_cost,
    )(head, cproj)

    if Sp != S:
        scores = scores[:, :S, :S]
    return scores


def _reference(seq, w_head, b_head, w_child, b_child, w_proj, b_proj):
    head = jax.nn.relu(seq @ w_head + b_head)
    child = jax.nn.relu(seq @ w_child + b_child)
    child_proj = child @ w_proj + b_proj
    return jnp.einsum("bsh,bth->bst", head, child_proj)


if __name__ == "__main__":
    # Small shapes consistent with the module: batch=2, seq_len=8,
    # input_dim=32, hidden_dim=32.
    B, S, D, H = 2, 8, 32, 32

    key = jax.random.PRNGKey(0)
    ks = jax.random.split(key, 7)

    seq = jax.random.normal(ks[0], (B, S, D), dtype=jnp.float32)

    # Deterministic parameter init (uniform, like nn.Linear's default range).
    def init_linear(kw, kb, fan_in, fan_out):
        bound = 1.0 / jnp.sqrt(fan_in)
        # Stored transposed: (fan_in, fan_out) so the kernel does x @ W.
        w = jax.random.uniform(kw, (fan_in, fan_out), jnp.float32, -bound, bound)
        b = jax.random.uniform(kb, (1, fan_out), jnp.float32, -bound, bound)
        return w, b

    w_head, b_head = init_linear(ks[1], ks[2], D, H)
    w_child, b_child = init_linear(ks[3], ks[4], D, H)
    w_proj, b_proj = init_linear(ks[5], ks[6], H, H)

    out = arc_biaffine_scorer(seq, w_head, b_head, w_child, b_child,
                              w_proj, b_proj)
    out = jax.block_until_ready(out)

    ref = _reference(seq, w_head, b_head, w_child, b_child, w_proj, b_proj)
    assert out.shape == (B, S, S)
    # bf16 MXU operands with f32 accumulation -> looser tolerance vs f32 ref.
    assert jnp.allclose(out, ref, atol=5e-2, rtol=5e-2), (
        float(jnp.max(jnp.abs(out - ref))))

    print("KERNEL_OK")
</pallas_src>

<mosaic_0001>
module attributes {stable_mosaic.version = 11 : i64} {
  func.func @_proj_kernel(%arg0: i32, %arg1: memref<16x32xbf16, #tpu.memory_space<vmem>>, %arg2: memref<32x32xbf16, #tpu.memory_space<vmem>>, %arg3: memref<32x32xbf16, #tpu.memory_space<vmem>>, %arg4: memref<32x32xbf16, #tpu.memory_space<vmem>>, %arg5: memref<3x32xf32, #tpu.memory_space<vmem>>, %arg6: memref<16x32xbf16, #tpu.memory_space<vmem>>, %arg7: memref<16x32xbf16, #tpu.memory_space<vmem>>) attributes {dimension_semantics = [#tpu.dimension_semantics<parallel>], iteration_bounds = array<i64: 1>, scalar_prefetch = 0 : i64, scratch_operands = 0 : i64, tpu.core_type = #tpu.core_type<tc>, window_params = [{transform_indices = @transform_0, window_bounds = array<i64: 16, 32>}, {pipeline_mode = #tpu.pipeline_mode<synchronous>, transform_indices = @transform_1, window_bounds = array<i64: 32, 32>}, {pipeline_mode = #tpu.pipeline_mode<synchronous>, transform_indices = @transform_2, window_bounds = array<i64: 32, 32>}, {pipeline_mode = #tpu.pipeline_mode<synchronous>, transform_indices = @transform_3, window_bounds = array<i64: 32, 32>}, {pipeline_mode = #tpu.pipeline_mode<synchronous>, transform_indices = @transform_4, window_bounds = array<i64: 3, 32>}, {transform_indices = @transform_5, window_bounds = array<i64: 16, 32>}, {transform_indices = @transform_6, window_bounds = array<i64: 16, 32>}]} {
    %c0 = arith.constant 0 : index
    %c0_0 = arith.constant 0 : index
    %0 = vector.load %arg1[%c0, %c0_0] : memref<16x32xbf16, #tpu.memory_space<vmem>>, vector<16x32xbf16>
    %c0_1 = arith.constant 0 : index
    %c0_2 = arith.constant 0 : index
    %1 = vector.load %arg5[%c0_1, %c0_2] : memref<3x32xf32, #tpu.memory_space<vmem>>, vector<1x32xf32>
    %c1 = arith.constant 1 : index
    %c0_3 = arith.constant 0 : index
    %2 = vector.load %arg5[%c1, %c0_3] : memref<3x32xf32, #tpu.memory_space<vmem>>, vector<1x32xf32>
    %c2 = arith.constant 2 : index
    %c0_4 = arith.constant 0 : index
    %3 = vector.load %arg5[%c2, %c0_4] : memref<3x32xf32, #tpu.memory_space<vmem>>, vector<1x32xf32>
    %c0_5 = arith.constant 0 : index
    %c0_6 = arith.constant 0 : index
    %4 = vector.load %arg2[%c0_5, %c0_6] : memref<32x32xbf16, #tpu.memory_space<vmem>>, vector<32x32xbf16>
    %cst = arith.constant dense<0.000000e+00> : vector<16x32xf32>
    %5 = tpu.matmul %0, %4, %cst {dimension_numbers = #tpu.dot_dimension_numbers<[1], [0], [0], [1], [0, 0, 1, 1], [], []>} : vector<16x32xbf16>, vector<32x32xbf16>, vector<16x32xf32> -> vector<16x32xf32>
    %6 = vector.broadcast %1 : vector<1x32xf32> to vector<16x32xf32>
    %7 = arith.addf %5, %6 : vector<16x32xf32>
    %cst_7 = arith.constant 0.000000e+00 : f32
    %8 = vector.broadcast %cst_7 : f32 to vector<16x32xf32>
    %9 = arith.maximumf %7, %8 : vector<16x32xf32>
    %c0_8 = arith.constant 0 : index
    %c0_9 = arith.constant 0 : index
    %10 = vector.load %arg3[%c0_8, %c0_9] : memref<32x32xbf16, #tpu.memory_space<vmem>>, vector<32x32xbf16>
    %cst_10 = arith.constant dense<0.000000e+00> : vector<16x32xf32>
    %11 = tpu.matmul %0, %10, %cst_10 {dimension_numbers = #tpu.dot_dimension_numbers<[1], [0], [0], [1], [0, 0, 1, 1], [], []>} : vector<16x32xbf16>, vector<32x32xbf16>, vector<16x32xf32> -> vector<16x32xf32>
    %12 = vector.broadcast %2 : vector<1x32xf32> to vector<16x32xf32>
    %13 = arith.addf %11, %12 : vector<16x32xf32>
    %cst_11 = arith.constant 0.000000e+00 : f32
    %14 = vector.broadcast %cst_11 : f32 to vector<16x32xf32>
    %15 = arith.maximumf %13, %14 : vector<16x32xf32>
    %16 = arith.truncf %15 : vector<16x32xf32> to vector<16x32xbf16>
    %c0_12 = arith.constant 0 : index
    %c0_13 = arith.constant 0 : index
    %17 = vector.load %arg4[%c0_12, %c0_13] : memref<32x32xbf16, #tpu.memory_space<vmem>>, vector<32x32xbf16>
    %cst_14 = arith.constant dense<0.000000e+00> : vector<16x32xf32>
    %18 = tpu.matmul %16, %17, %cst_14 {dimension_numbers = #tpu.dot_dimension_numbers<[1], [0], [0], [1], [0, 0, 1, 1], [], []>} : vector<16x32xbf16>, vector<32x32xbf16>, vector<16x32xf32> -> vector<16x32xf32>
    %19 = vector.broadcast %3 : vector<1x32xf32> to vector<16x32xf32>
    %20 = arith.addf %18, %19 : vector<16x32xf32>
    %21 = arith.truncf %9 : vector<16x32xf32> to vector<16x32xbf16>
    %c0_15 = arith.constant 0 : index
    %c0_16 = arith.constant 0 : index
    %22 = vector.load %arg6[%c0_15, %c0_16] : memref<16x32xbf16, #tpu.memory_space<vmem>>, vector<16x32xbf16>
    tpu.vector_store %arg6[%c0_15, %c0_16], %21 {strides = array<i32>} : memref<16x32xbf16, #tpu.memory_space<vmem>>, vector<16x32xbf16>,
    %23 = arith.truncf %20 : vector<16x32xf32> to vector<16x32xbf16>
    %c0_17 = arith.constant 0 : index
    %c0_18 = arith.constant 0 : index
    %24 = vector.load %arg7[%c0_17, %c0_18] : memref<16x32xbf16, #tpu.memory_space<vmem>>, vector<16x32xbf16>
    tpu.vector_store %arg7[%c0_17, %c0_18], %23 {strides = array<i32>} : memref<16x32xbf16, #tpu.memory_space<vmem>>, vector<16x32xbf16>,
    return
  }
  func.func @transform_0(%arg0: i32) -> (i32, i32) {
    %c0_i32 = arith.constant 0 : i32
    %c0_i32_0 = arith.constant 0 : i32
    return %arg0, %c0_i32 : i32, i32
  }
  func.func @transform_1(%arg0: i32) -> (i32, i32) {
    %c0_i32 = arith.constant 0 : i32
    %c0_i32_0 = arith.constant 0 : i32
    %c0_i32_1 = arith.constant 0 : i32
    return %c0_i32, %c0_i32_0 : i32, i32
  }
  func.func @transform_2(%arg0: i32) -> (i32, i32) {
    %c0_i32 = arith.constant 0 : i32
    %c0_i32_0 = arith.constant 0 : i32
    %c0_i32_1 = arith.constant 0 : i32
    return %c0_i32, %c0_i32_0 : i32, i32
  }
  func.func @transform_3(%arg0: i32) -> (i32, i32) {
    %c0_i32 = arith.constant 0 : i32
    %c0_i32_0 = arith.constant 0 : i32
    %c0_i32_1 = arith.constant 0 : i32
    return %c0_i32, %c0_i32_0 : i32, i32
  }
  func.func @transform_4(%arg0: i32) -> (i32, i32) {
    %c0_i32 = arith.constant 0 : i32
    %c0_i32_0 = arith.constant 0 : i32
    %c0_i32_1 = arith.constant 0 : i32
    return %c0_i32, %c0_i32_0 : i32, i32
  }
  func.func @transform_5(%arg0: i32) -> (i32, i32) {
    %c0_i32 = arith.constant 0 : i32
    %c0_i32_0 = arith.constant 0 : i32
    return %arg0, %c0_i32 : i32, i32
  }
  func.func @transform_6(%arg0: i32) -> (i32, i32) {
    %c0_i32 = arith.constant 0 : i32
    %c0_i32_0 = arith.constant 0 : i32
    return %arg0, %c0_i32 : i32, i32
  }
}

</mosaic_0001>

<llo_original>
// kernel: tpu_custom_call.1
$region0: #{tpu_custom_call.1}
  #allocation0 [shape = 'u32[]', space=smem, size = 0x4, offset = 0x4, fixed_abs, tag = 'smem constant byte address 0x4 - core index']
  #allocation1 [shape = 'u32[72,128]{1,0:T(1,128)}', space=vmem, size = 0x9000, scoped, tag = 'internal scratch']
  %s0 = inlined_call_operand.hbm [shape: bf16[16,32], index: 0, kind: input, shape index: {}]
  %s1 = inlined_call_operand.hbm [shape: bf16[32,32], index: 1, kind: input, shape index: {}]
  %s2 = inlined_call_operand.hbm [shape: bf16[32,32], index: 2, kind: input, shape index: {}]
  %s3 = inlined_call_operand.hbm [shape: bf16[32,32], index: 3, kind: input, shape index: {}]
  %s4 = inlined_call_operand.hbm [shape: f32[3,32], index: 4, kind: input, shape index: {}]
  %s5 = inlined_call_operand.hbm [shape: bf16[16,32], index: 5, kind: output, shape index: {0}]
  %s6 = inlined_call_operand.hbm [shape: bf16[16,32], index: 6, kind: output, shape index: {1}]
  %7 = xla_tuple %s5, %s6
  %s8 = sld [smem:[#allocation0]]
  $region58: #{tpu_custom_call.1} parent=0
    _
  %s10 = ssub.s32 1, %s8
  %s11 = scalar_select 0, %s10, %s8
  $region1: #{tpu_custom_call.1} parent=0
    #allocation2 [shape = 'u8[4096]{0}', space=vmem, size = 0x1000, scoped, tag = 'input window, operand 0, single buffered']
    #allocation3 [shape = 's32[1]{0}', space=sflag, size = 0x4, scoped, tag = 'scoped memory for tpu_custom_call.1']
    #allocation4 [shape = 's32[1]{0}', space=sflag, size = 0x4, scoped, tag = 'scoped memory for tpu_custom_call.1']
    #allocation5 [shape = 'u8[8192]{0}', space=vmem, size = 0x2000, scoped, tag = 'input window, operand 1, single buffered']
    #allocation6 [shape = 's32[1]{0}', space=sflag, size = 0x4, scoped, tag = 'scoped memory for tpu_custom_call.1']
    #allocation7 [shape = 'u8[8192]{0}', space=vmem, size = 0x2000, scoped, tag = 'input window, operand 2, single buffered']
    #allocation8 [shape = 'u8[8192]{0}', space=vmem, size = 0x2000, scoped, tag = 'input window, operand 3, single buffered']
    #allocation9 [shape = 's32[1]{0}', space=sflag, size = 0x4, scoped, tag = 'scoped memory for tpu_custom_call.1']
    #allocation10 [shape = 'u8[2048]{0}', space=vmem, size = 0x800, scoped, tag = 'input window, operand 4, single buffered']
    #allocation11 [shape = 'u8[4096]{0}', space=vmem, size = 0x1000, scoped, tag = 'output window, operand 0, single buffered']
    #allocation12 [shape = 'u8[4096]{0}', space=vmem, size = 0x1000, scoped, tag = 'output window, operand 1, single buffered']
    #allocation13 [shape = 's32[1]{0}', space=sflag, size = 0x4, scoped, tag = 'scoped memory for tpu_custom_call.1']
    %12 = vsyncpa [#allocation3], 0
    %13 = vsyncpa [#allocation6], 0
    %14 = vsyncpa [#allocation9], 0
    %15 = vsyncpa [#allocation4], 0
    %16 = vsyncpa [#allocation13], 0
    // Predicated region
    $region2: #{tpu_custom_call.1} parent=1 // pred_check
      _
    $region3: #{tpu_custom_call.1} parent=1 // pred_check_branch
      %18 = sbr.rel (0) target = $region5
    $region4: #{tpu_custom_call.1} parent=1 // pred_region
      %20 = vsyncadd [#allocation3], 0
      %s21 = sshll.u32 %s0, 4
      %s22 = int_to_ptr.hbm [resolvable:$true] %s21
      %s23 = sshll.u32 [#allocation2], 4
      %s24 = int_to_ptr.vmem [resolvable:$true] %s23
      %29 = dma.hbm_to_vmem [thread:$0]  %s22, 128, %s24, [#allocation3], 64, 64, 4
    $region5: #{tpu_custom_call.1} parent=1 // pred_fallthru
      _
    // Predicated region
    $region6: #{tpu_custom_call.1} parent=1 // pred_check
      _
    $region7: #{tpu_custom_call.1} parent=1 // pred_check_branch
      %31 = sbr.rel (0) target = $region9
    $region8: #{tpu_custom_call.1} parent=1 // pred_region
      %33 = vsyncadd [#allocation6], 0
      %s34 = sshll.u32 %s1, 4
      %s35 = int_to_ptr.hbm [resolvable:$true] %s34
      %s36 = sshll.u32 [#allocation5], 4
      %s37 = int_to_ptr.vmem [resolvable:$true] %s36
      %42 = dma.hbm_to_vmem [thread:$0]  %s35, 256, %s37, [#allocation6], 64, 64, 4
    $region9: #{tpu_custom_call.1} parent=1 // pred_fallthru
      _
    // Predicated region
    $region10: #{tpu_custom_call.1} parent=1 // pred_check
      _
    $region11: #{tpu_custom_call.1} parent=1 // pred_check_branch
      %44 = sbr.rel (0) target = $region13
    $region12: #{tpu_custom_call.1} parent=1 // pred_region
      %46 = vsyncadd [#allocation6], 0
      %s47 = sshll.u32 %s2, 4
      %s48 = int_to_ptr.hbm [resolvable:$true] %s47
      %s49 = sshll.u32 [#allocation7], 4
      %s50 = int_to_ptr.vmem [resolvable:$true] %s49
      %55 = dma.hbm_to_vmem [thread:$0]  %s48, 256, %s50, [#allocation6], 64, 64, 4
    $region13: #{tpu_custom_call.1} parent=1 // pred_fallthru
      _
    // Predicated region
    $region14: #{tpu_custom_call.1} parent=1 // pred_check
      _
    $region15: #{tpu_custom_call.1} parent=1 // pred_check_branch
      %57 = sbr.rel (0) target = $region17
    $region16: #{tpu_custom_call.1} parent=1 // pred_region
      %59 = vsyncadd [#allocation9], 0
      %s60 = sshll.u32 %s3, 4
      %s61 = int_to_ptr.hbm [resolvable:$true] %s60
      %s62 = sshll.u32 [#allocation8], 4
      %s63 = int_to_ptr.vmem [resolvable:$true] %s62
      %68 = dma.hbm_to_vmem [thread:$0]  %s61, 256, %s63, [#allocation9], 64, 64, 4
    $region17: #{tpu_custom_call.1} parent=1 // pred_fallthru
      _
    // Predicated region
    $region18: #{tpu_custom_call.1} parent=1 // pred_check
      _
    $region19: #{tpu_custom_call.1} parent=1 // pred_check_branch
      %70 = sbr.rel (0) target = $region21
    $region20: #{tpu_custom_call.1} parent=1 // pred_region
      %72 = vsyncadd [#allocation9], 0
      %s74 = sshll.u32 %s4, 4
      %s75 = int_to_ptr.hbm [resolvable:$true] %s74
      %s76 = sshll.u32 [#allocation10], 4
      %s77 = int_to_ptr.vmem [resolvable:$true] %s76
      %79 = dma.hbm_to_vmem [thread:$0]  %s75, 64, %s77, [#allocation9]
    $region21: #{tpu_custom_call.1} parent=1 // pred_fallthru
      _
    // Predicated region
    $region22: #{tpu_custom_call.1} parent=1 // pred_check
      _
    $region23: #{tpu_custom_call.1} parent=1 // pred_check_branch
      %81 = sbr.rel (0) target = $region25
    $region24: #{tpu_custom_call.1} parent=1 // pred_region
      %83 = dma.done [#allocation3], 128
    $region25: #{tpu_custom_call.1} parent=1 // pred_fallthru
      _
    // Predicated region
    $region26: #{tpu_custom_call.1} parent=1 // pred_check
      _
    $region27: #{tpu_custom_call.1} parent=1 // pred_check_branch
      %85 = sbr.rel (0) target = $region29
    $region28: #{tpu_custom_call.1} parent=1 // pred_region
      %87 = dma.done [#allocation6], 256
    $region29: #{tpu_custom_call.1} parent=1 // pred_fallthru
      _
    // Predicated region
    $region30: #{tpu_custom_call.1} parent=1 // pred_check
      _
    $region31: #{tpu_custom_call.1} parent=1 // pred_check_branch
      %89 = sbr.rel (0) target = $region33
    $region32: #{tpu_custom_call.1} parent=1 // pred_region
      %91 = dma.done [#allocation6], 256
    $region33: #{tpu_custom_call.1} parent=1 // pred_fallthru
      _
    // Predicated region
    $region34: #{tpu_custom_call.1} parent=1 // pred_check
      _
    $region35: #{tpu_custom_call.1} parent=1 // pred_check_branch
      %93 = sbr.rel (0) target = $region37
    $region36: #{tpu_custom_call.1} parent=1 // pred_region
      %95 = dma.done [#allocation9], 256
    $region37: #{tpu_custom_call.1} parent=1 // pred_fallthru
      _
    // Predicated region
    $region38: #{tpu_custom_call.1} parent=1 // pred_check
      _
    $region39: #{tpu_custom_call.1} parent=1 // pred_check_branch
      %97 = sbr.rel (0) target = $region41
    $region40: #{tpu_custom_call.1} parent=1 // pred_region
      %99 = dma.done [#allocation9], 64
    $region41: #{tpu_custom_call.1} parent=1 // pred_fallthru
      _
    %v101 = vld [vmem:[#allocation2] sm:$0xf]
    %v102 = vld [vmem:[#allocation2 + $0x4] sm:$0xf]
    %v103 = vld [vmem:[#allocation10] sm:$0x1]
    %v104 = vld [vmem:[#allocation10 + $0x1] sm:$0x1]
    %v105 = vld [vmem:[#allocation10 + $0x2] sm:$0x1]
    %v106 = vld [vmem:[#allocation5] sm:$0xf]
    %v107 = vld [vmem:[#allocation5 + $0x4] sm:$0xf]
    %v108 = vld [vmem:[#allocation5 + $0x8] sm:$0xf]
    %v109 = vld [vmem:[#allocation5 + $0xc] sm:$0xf]
    %v110 = vperm.slane %v103, 0
    %v113 = vunpack.c.l.b16 %v101
    %v114 = vunpack.c.l.b16 %v102
    %v115 = vpack.c.b16 %v114, %v113
    %v120 = vunpack.c.l.b16 %v106
    %v121 = vunpack.c.l.b16 %v107
    %v122 = vunpack.c.l.b16 %v108
    %v123 = vunpack.c.l.b16 %v109
    %v124 = vpack.c.b16 %v121, %v120
    %v125 = vpack.c.b16 %v123, %v122
    %vm128 = vcmask 261120
    %v130 = vsel %vm128, %v115, 0
    %132 = vmatpush.bf16.msra.mxu0 0
    %133 = vmatpush.bf16.msra.mxu0 0
    %134 = vmatpush.bf16.msra.mxu0 0
    %135 = vmatpush.bf16.msra.mxu0 0
    %136 = vmatpush.bf16.msra.mxu0 0
    %137 = vmatpush.bf16.msra.mxu0 0
    %138 = vmatpush.bf16.msra.mxu0 %v125
    %139 = vmatpush.bf16.msra.mxu0 %v124
    %140 = vmatmul.bf16.gmra.mxu0 %v130
    %v141 = vpop.f32.mrf.mxu0
    %v142 = vadd.f32 %v110, %v141
    %v143 = vpop.f32.mrf.mxu0
    %v144 = vadd.f32 %v110, %v143
    %145 = vdwg.mxu0
    %v146 = vmax.f32 %v142, 0.0
    %v147 = vmax.f32 %v144, 0.0
    %v148 = vld [vmem:[#allocation7] sm:$0xf]
    %v149 = vld [vmem:[#allocation7 + $0x4] sm:$0xf]
    %v150 = vld [vmem:[#allocation7 + $0x8] sm:$0xf]
    %v151 = vld [vmem:[#allocation7 + $0xc] sm:$0xf]
    %v152 = vperm.slane %v104, 0
    %v157 = vunpack.c.l.b16 %v148
    %v158 = vunpack.c.l.b16 %v149
    %v159 = vunpack.c.l.b16 %v150
    %v160 = vunpack.c.l.b16 %v151
    %v161 = vpack.c.b16 %v158, %v157
    %v162 = vpack.c.b16 %v160, %v159
    %165 = vmatpush.bf16.msra.mxu0 0
    %166 = vmatpush.bf16.msra.mxu0 0
    %167 = vmatpush.bf16.msra.mxu0 0
    %168 = vmatpush.bf16.msra.mxu0 0
    %169 = vmatpush.bf16.msra.mxu0 0
    %170 = vmatpush.bf16.msra.mxu0 0
    %171 = vmatpush.bf16.msra.mxu0 %v162
    %172 = vmatpush.bf16.msra.mxu0 %v161
    %173 = vmatmul.bf16.gmra.mxu0 %v130
    %v174 = vpop.f32.mrf.mxu0
    %v175 = vadd.f32 %v152, %v174
    %v176 = vpop.f32.mrf.mxu0
    %v177 = vadd.f32 %v152, %v176
    %178 = vdwg.mxu0
    %v179 = vmax.f32 %v175, 0.0
    %v180 = vmax.f32 %v177, 0.0
    %v181 = vpack.c.bf16 %v180, %v179
    %v182 = vld [vmem:[#allocation8] sm:$0xf]
    %v183 = vld [vmem:[#allocation8 + $0x4] sm:$0xf]
    %v184 = vld [vmem:[#allocation8 + $0x8] sm:$0xf]
    %v185 = vld [vmem:[#allocation8 + $0xc] sm:$0xf]
    %v186 = vperm.slane %v105, 0
    %v191 = vunpack.c.l.b16 %v182
    %v192 = vunpack.c.l.b16 %v183
    %v193 = vunpack.c.l.b16 %v184
    %v194 = vunpack.c.l.b16 %v185
    %v195 = vpack.c.b16 %v192, %v191
    %v196 = vpack.c.b16 %v194, %v193
    %v200 = vsel %vm128, %v181, 0
    %202 = vmatpush.bf16.msra.mxu0 0
    %203 = vmatpush.bf16.msra.mxu0 0
    %204 = vmatpush.bf16.msra.mxu0 0
    %205 = vmatpush.bf16.msra.mxu0 0
    %206 = vmatpush.bf16.msra.mxu0 0
    %207 = vmatpush.bf16.msra.mxu0 0
    %208 = vmatpush.bf16.msra.mxu0 %v196
    %209 = vmatpush.bf16.msra.mxu0 %v195
    %210 = vmatmul.bf16.gmra.mxu0 %v200
    %v211 = vpop.f32.mrf.mxu0
    %v212 = vadd.f32 %v186, %v211
    %v213 = vpop.f32.mrf.mxu0
    %v214 = vadd.f32 %v186, %v213
    %215 = vdwg.mxu0
    %v216 = vpack.c.bf16 %v146, %v146
    %v217 = vpack.c.bf16 %v147, %v147
    %vm218 = vcmask 257024
    %219 = vst.msk [vmem:[#allocation11] sm:$0xf] %vm218, %v216
    %220 = vst.msk [vmem:[#allocation11 + $0x4] sm:$0xf] %vm218, %v217
    %v221 = vpack.c.bf16 %v212, %v212
    %v222 = vpack.c.bf16 %v214, %v214
    %223 = vst.msk [vmem:[#allocation12] sm:$0xf] %vm218, %v221
    %224 = vst.msk [vmem:[#allocation12 + $0x4] sm:$0xf] %vm218, %v222
    // Predicated region
    $region42: #{tpu_custom_call.1} parent=1 // pred_check
      _
    $region43: #{tpu_custom_call.1} parent=1 // pred_check_branch
      %226 = sbr.rel (0) target = $region45
    $region44: #{tpu_custom_call.1} parent=1 // pred_region
      %228 = vsyncadd [#allocation4], 0
      %s229 = sshll.u32 [#allocation11], 4
      %s230 = int_to_ptr.vmem [resolvable:$true] %s229
      %s231 = sshll.u32 %s5, 4
      %s232 = int_to_ptr.hbm [resolvable:$true] %s231
      %237 = dma.vmem_to_hbm [thread:$0]  %s230, 128, %s232, [#allocation4], 64, 64, 4
    $region45: #{tpu_custom_call.1} parent=1 // pred_fallthru
      _
    // Predicated region
    $region46: #{tpu_custom_call.1} parent=1 // pred_check
      _
    $region47: #{tpu_custom_call.1} parent=1 // pred_check_branch
      %239 = sbr.rel (0) target = $region49
    $region48: #{tpu_custom_call.1} parent=1 // pred_region
      %241 = vsyncadd [#allocation13], 0
      %s242 = sshll.u32 [#allocation12], 4
      %s243 = int_to_ptr.vmem [resolvable:$true] %s242
      %s244 = sshll.u32 %s6, 4
      %s245 = int_to_ptr.hbm [resolvable:$true] %s244
      %250 = dma.vmem_to_hbm [thread:$0]  %s243, 128, %s245, [#allocation13], 64, 64, 4
    $region49: #{tpu_custom_call.1} parent=1 // pred_fallthru
      _
    // Predicated region
    $region50: #{tpu_custom_call.1} parent=1 // pred_check
      _
    $region51: #{tpu_custom_call.1} parent=1 // pred_check_branch
      %252 = sbr.rel (0) target = $region53
    $region52: #{tpu_custom_call.1} parent=1 // pred_region
      %254 = dma.done [#allocation4], 128
    $region53: #{tpu_custom_call.1} parent=1 // pred_fallthru
      _
    // Predicated region
    $region54: #{tpu_custom_call.1} parent=1 // pred_check
      _
    $region55: #{tpu_custom_call.1} parent=1 // pred_check_branch
      %256 = sbr.rel (0) target = $region57
    $region56: #{tpu_custom_call.1} parent=1 // pred_region
      %258 = dma.done [#allocation13], 128
    $region57: #{tpu_custom_call.1} parent=1 // pred_fallthru
      _
    %259 = vsyncpa [#allocation3], 1
    %260 = vsyncpa [#allocation6], 1
    %261 = vsyncpa [#allocation9], 1
    %262 = vsyncpa [#allocation4], 1
    %263 = vsyncpa [#allocation13], 1

</llo_original>
